<compile_context>
chip_gen: v7x
topology: tpu7x:2x2x1
jax: 0.10.0
libtpu: 0.0.40
codegen_flags: <defaults>
</compile_context>

<pallas_src>
import functools

import jax
import jax.numpy as jnp
import numpy as np
from jax.experimental import pallas as pl
from jax.experimental.pallas import tpu as pltpu


def _round_up(x, m):
    return -(-x // m) * m


def _gelu_exact(x):
    # PyTorch nn.GELU() default is the exact (erf-based) GELU.
    return 0.5 * x * (1.0 + jax.lax.erf(x * jnp.float32(0.7071067811865476)))


def _fused_convT(src_ref, w_ref, b_ref, *, K, CW, compute_dtype):
    """One stride-1 ConvTranspose1d over a packed (Ci, CW + 128) slab.

    Reads K shifted (Ci, CW) slices, stacks them along sublanes (im2col) and
    performs a single MXU matmul with the packed weight (Co, K*Ci).
    Returns (Co, CW) f32.  Bias is added to every column; the caller masks the
    inter-sample halo columns.
    """
    parts = [src_ref[:, k:k + CW].astype(compute_dtype) for k in range(K)]
    xs = jnp.concatenate(parts, axis=0)                        # (K*Ci, CW)
    y = jnp.dot(w_ref[...], xs, preferred_element_type=jnp.float32)
    return y + b_ref[...]


def conv1d_decoder_kernel(z_ref, w1_ref, b1_ref, w2_ref, b2_ref, w3_ref, b3_ref,
                          m1_ref, m2_ref, o_ref, xe1_ref, xe2_ref,
                          *, K, CW, compute_dtype):
    # Keep the 128-lane tail of each activation scratch zero so the shifted
    # reads of the next layer see the implicit right zero padding.  (Done every
    # step so it is correct regardless of how grid steps map to cores.)
    xe1_ref[:, CW:] = jnp.zeros((xe1_ref.shape[0], xe1_ref.shape[1] - CW),
                                xe1_ref.dtype)
    xe2_ref[:, CW:] = jnp.zeros((xe2_ref.shape[0], xe2_ref.shape[1] - CW),
                                xe2_ref.dtype)

    # Layer 1: shifted slices are read directly from the (pre-padded) input block.
    y1 = _fused_convT(z_ref, w1_ref, b1_ref, K=K, CW=CW, compute_dtype=compute_dtype)
    h1 = _gelu_exact(y1) * m1_ref[...]       # mask re-zeroes inter-sample halos
    xe1_ref[:, :CW] = h1                     # lane-dense aligned store

    y2 = _fused_convT(xe1_ref, w2_ref, b2_ref, K=K, CW=CW, compute_dtype=compute_dtype)
    h2 = _gelu_exact(y2) * m2_ref[...]
    xe2_ref[:, :CW] = h2

    y3 = _fused_convT(xe2_ref, w3_ref, b3_ref, K=K, CW=CW, compute_dtype=compute_dtype)
    o_ref[...] = jax.nn.sigmoid(y3)          # lane-dense unmasked store


# ---------------------------------------------------------------------------
# Wrapper
# ---------------------------------------------------------------------------
def conv1d_decoder_forward(z, params, kernel_size, padding=1,
                           compute_dtype=jnp.float32):
    """z: (N, feature_dim//8, L0) f32.
    params: 3x (weight (Ci, Co, K) in PyTorch ConvTranspose1d layout, bias (Co,)).
    Returns (N, feature_dim, L0 + 3*(K - 1 - 2*padding)) f32."""
    N, C0, L0 = z.shape
    K = int(kernel_size)
    pad = int(padding)
    ppad = K - 1 - pad                 # zero padding of the equivalent correlation
    g = K - 1 - 2 * pad                # per-layer length growth
    assert 0 <= pad <= K - 1, "requires 0 <= padding <= kernel_size - 1 (stride=1)"
    assert K - 1 <= 128

    (w1, b1), (w2, b2), (w3, b3) = params
    C1, C2, C3 = w1.shape[1], w2.shape[1], w3.shape[1]
    L1, L2, L3 = L0 + g, L0 + 2 * g, L0 + 3 * g
    assert min(L1, L2, L3) >= 1, "output length must stay positive"

    # Packed-lane layout: each sample occupies a slot of S columns; layer-i
    # activations of sample j live at columns [j*S + off[i], j*S + off[i] + L_i).
    off = (3 * ppad, 2 * ppad, ppad, 0)
    S = L0 + 4 * ppad
    NB = min(N, max(1, -(-512 // S)))            # samples per grid step (~>=512 lanes)
    G = -(-N // NB)                              # grid steps (chunks)
    Np = G * NB
    CW = _round_up(NB * S, 128)                  # lane-dense slab width
    CWIN = CW + 128                              # + zero tail for shifted reads

    # Channel dims padded to sublane multiples of 8.
    C0p, C1p, C2p, C3p = (_round_up(c, 8) for c in (C0, C1, C2, C3))

    # ---- pack the input: (N, C0, L0) -> (G, C0p, CWIN), zeros elsewhere.
    zp = jnp.pad(z.astype(jnp.float32),
                 ((0, Np - N), (0, C0p - C0), (off[0], S - off[0] - L0)))
    zp = zp.reshape(G, NB, C0p, S).transpose(0, 2, 1, 3).reshape(G, C0p, NB * S)
    zp = jnp.pad(zp, ((0, 0), (0, 0), (0, CWIN - NB * S)))

    # ---- pack weights: (Ci, Co, K) -> flipped, channel-swapped im2col (Cop, K*Cip).
    def prep_w(w, cip, cop):
        ci, co, k = w.shape
        wf = jnp.transpose(w[:, :, ::-1], (2, 1, 0))              # (K, Co, Ci)
        wf = jnp.pad(wf, ((0, 0), (0, cop - co), (0, cip - ci)))  # pad channels
        return jnp.transpose(wf, (1, 0, 2)).reshape(cop, k * cip).astype(compute_dtype)

    def prep_b(b, cop):
        return jnp.pad(b, (0, cop - b.shape[0]))[:, None].astype(jnp.float32)

    w1p, w2p, w3p = prep_w(w1, C0p, C1p), prep_w(w2, C1p, C2p), prep_w(w3, C2p, C3p)
    b1p, b2p, b3p = prep_b(b1, C1p), prep_b(b2, C2p), prep_b(b3, C3p)

    # ---- static validity masks (zero the inter-sample halo columns of h1, h2).
    def make_mask(o, L):
        m = np.zeros((1, CW), np.float32)
        for j in range(NB):
            m[0, j * S + o: j * S + o + L] = 1.0
        return jnp.asarray(m)

    mask1, mask2 = make_mask(off[1], L1), make_mask(off[2], L2)

    def bcast(shape):
        return pl.BlockSpec(shape, lambda i: (0,) * len(shape))

    out = pl.pallas_call(
        functools.partial(conv1d_decoder_kernel, K=K, CW=CW,
                          compute_dtype=compute_dtype),
        out_shape=jax.ShapeDtypeStruct((G, C3p, CW), jnp.float32),
        grid_spec=pltpu.PrefetchScalarGridSpec(
            num_scalar_prefetch=0,
            grid=(G,),
            in_specs=[
                pl.BlockSpec((None, C0p, CWIN), lambda i: (i, 0, 0)),  # packed input chunk
                bcast((C1p, K * C0p)), bcast((C1p, 1)),                # layer 1 W', b
                bcast((C2p, K * C1p)), bcast((C2p, 1)),                # layer 2 W', b
                bcast((C3p, K * C2p)), bcast((C3p, 1)),                # layer 3 W', b
                bcast((1, CW)), bcast((1, CW)),                        # halo masks
            ],
            out_specs=pl.BlockSpec((None, C3p, CW), lambda i: (i, 0, 0)),
            scratch_shapes=[
                pltpu.VMEM((C1p, CWIN), jnp.float32),   # h1 slab (+ zero tail)
                pltpu.VMEM((C2p, CWIN), jnp.float32),   # h2 slab (+ zero tail)
            ],
        ),
        compiler_params=pltpu.CompilerParams(
            # TODO(synk): on v7x, CORE_PARALLEL over the chunk axis would shard
            # the two TensorCores explicitly; "parallel" is the portable choice.
            dimension_semantics=("parallel",),
        ),
    )(zp, w1p, b1p, w2p, b2p, w3p, b3p, mask1, mask2)

    # ---- unpack: (G, C3p, CW) -> (N, C3, L3)  (layer-3 data sits at slot offset 0)
    out = out[:, :C3, :NB * S].reshape(G, C3, NB, S).transpose(0, 2, 1, 3)
    out = out.reshape(Np, C3, S)[:N, :, :L3]
    return out


# ---------------------------------------------------------------------------
# Pure-JAX reference (same math, plain jnp) for validation
# ---------------------------------------------------------------------------
def _ref_forward(z, params, K, padding=1):
    def convT(x, w, b):
        ppad = K - 1 - padding
        Lout = x.shape[2] + K - 1 - 2 * padding
        xp = jnp.pad(x, ((0, 0), (0, 0), (ppad, ppad)))
        wf = jnp.transpose(w[:, :, ::-1], (2, 1, 0))  # (K, Co, Ci)
        y = jnp.broadcast_to(b[None, :, None], (x.shape[0], w.shape[1], Lout))
        for k in range(K):
            y = y + jnp.einsum("oc,ncl->nol", wf[k], xp[:, :, k:k + Lout])
        return y

    (w1, b1), (w2, b2), (w3, b3) = params
    h = jax.nn.gelu(convT(z, w1, b1), approximate=False)
    h = jax.nn.gelu(convT(h, w2, b2), approximate=False)
    return jax.nn.sigmoid(convT(h, w3, b3))


# ---------------------------------------------------------------------------
if __name__ == "__main__":
    key = jax.random.PRNGKey(0)
    batch = 2
    feature_dim = 32          # channels 4 -> 8 -> 16 -> 32
    kernel_size = 4           # length grows by (K-3)=1 per layer: 16->17->18->19
    L0 = 16

    C0, C1, C2, C3 = feature_dim // 8, feature_dim // 4, feature_dim // 2, feature_dim
    ks = jax.random.split(key, 7)
    z = jax.random.normal(ks[0], (batch, C0, L0), jnp.float32)

    def init_layer(kw, kb, ci, co):
        # PyTorch-style uniform(-1/sqrt(Ci*K), 1/sqrt(Ci*K)), deterministic.
        bound = 1.0 / np.sqrt(ci * kernel_size)
        w = jax.random.uniform(kw, (ci, co, kernel_size), jnp.float32, -bound, bound)
        b = jax.random.uniform(kb, (co,), jnp.float32, -bound, bound)
        return w, b

    params = [
        init_layer(ks[1], ks[2], C0, C1),
        init_layer(ks[3], ks[4], C1, C2),
        init_layer(ks[5], ks[6], C2, C3),
    ]

    out = conv1d_decoder_forward(z, params, kernel_size)
    out = jax.block_until_ready(out)

    ref = _ref_forward(z, params, kernel_size)
    assert out.shape == ref.shape == (batch, C3, L0 + 3 * (kernel_size - 3))
    np.testing.assert_allclose(np.asarray(out), np.asarray(ref), rtol=1e-4, atol=1e-4)
    print("KERNEL_OK")
</pallas_src>

<mosaic_0001>
module attributes {stable_mosaic.version = 11 : i64} {
  func.func @conv1d_decoder_kernel(%arg0: i32, %arg1: memref<1x8x256xf32, #tpu.memory_space<vmem>>, %arg2: memref<8x32xf32, #tpu.memory_space<vmem>>, %arg3: memref<8x1xf32, #tpu.memory_space<vmem>>, %arg4: memref<16x32xf32, #tpu.memory_space<vmem>>, %arg5: memref<16x1xf32, #tpu.memory_space<vmem>>, %arg6: memref<32x64xf32, #tpu.memory_space<vmem>>, %arg7: memref<32x1xf32, #tpu.memory_space<vmem>>, %arg8: memref<1x128xf32, #tpu.memory_space<vmem>>, %arg9: memref<1x128xf32, #tpu.memory_space<vmem>>, %arg10: memref<1x32x128xf32, #tpu.memory_space<vmem>>, %arg11: memref<8x256xf32, #tpu.memory_space<vmem>>, %arg12: memref<16x256xf32, #tpu.memory_space<vmem>>) attributes {dimension_semantics = [#tpu.dimension_semantics<parallel>], iteration_bounds = array<i64: 1>, scalar_prefetch = 0 : i64, scratch_operands = 2 : i64, tpu.core_type = #tpu.core_type<tc>, window_params = [{transform_indices = @transform_0, window_bounds = array<i64: 1, 8, 256>}, {pipeline_mode = #tpu.pipeline_mode<synchronous>, transform_indices = @transform_1, window_bounds = array<i64: 8, 32>}, {pipeline_mode = #tpu.pipeline_mode<synchronous>, transform_indices = @transform_2, window_bounds = array<i64: 8, 1>}, {pipeline_mode = #tpu.pipeline_mode<synchronous>, transform_indices = @transform_3, window_bounds = array<i64: 16, 32>}, {pipeline_mode = #tpu.pipeline_mode<synchronous>, transform_indices = @transform_4, window_bounds = array<i64: 16, 1>}, {pipeline_mode = #tpu.pipeline_mode<synchronous>, transform_indices = @transform_5, window_bounds = array<i64: 32, 64>}, {pipeline_mode = #tpu.pipeline_mode<synchronous>, transform_indices = @transform_6, window_bounds = array<i64: 32, 1>}, {pipeline_mode = #tpu.pipeline_mode<synchronous>, transform_indices = @transform_7, window_bounds = array<i64: 1, 128>}, {pipeline_mode = #tpu.pipeline_mode<synchronous>, transform_indices = @transform_8, window_bounds = array<i64: 1, 128>}, {transform_indices = @transform_9, window_bounds = array<i64: 1, 32, 128>}]} {
    %cst = arith.constant 0.000000e+00 : f32
    %0 = vector.broadcast %cst : f32 to vector<8x128xf32>
    %c0 = arith.constant 0 : index
    %c128 = arith.constant 128 : index
    %1 = vector.load %arg11[%c0, %c128] : memref<8x256xf32, #tpu.memory_space<vmem>>, vector<8x128xf32>
    tpu.vector_store %arg11[%c0, %c128], %0 {strides = array<i32>} : memref<8x256xf32, #tpu.memory_space<vmem>>, vector<8x128xf32>,
    %cst_0 = arith.constant 0.000000e+00 : f32
    %2 = vector.broadcast %cst_0 : f32 to vector<16x128xf32>
    %c0_1 = arith.constant 0 : index
    %c128_2 = arith.constant 128 : index
    %3 = vector.load %arg12[%c0_1, %c128_2] : memref<16x256xf32, #tpu.memory_space<vmem>>, vector<16x128xf32>
    tpu.vector_store %arg12[%c0_1, %c128_2], %2 {strides = array<i32>} : memref<16x256xf32, #tpu.memory_space<vmem>>, vector<16x128xf32>,
    %c0_3 = arith.constant 0 : index
    %c0_4 = arith.constant 0 : index
    %c0_5 = arith.constant 0 : index
    %4 = vector.load %arg1[%c0_3, %c0_4, %c0_5] : memref<1x8x256xf32, #tpu.memory_space<vmem>>, vector<1x8x128xf32>
    %5 = vector.shape_cast %4 : vector<1x8x128xf32> to vector<8x128xf32>
    %c0_6 = arith.constant 0 : index
    %c0_7 = arith.constant 0 : index
    %c1 = arith.constant 1 : index
    %6 = vector.load %arg1[%c0_6, %c0_7, %c1] : memref<1x8x256xf32, #tpu.memory_space<vmem>>, vector<1x8x128xf32>
    %7 = vector.shape_cast %6 : vector<1x8x128xf32> to vector<8x128xf32>
    %c0_8 = arith.constant 0 : index
    %c0_9 = arith.constant 0 : index
    %c2 = arith.constant 2 : index
    %8 = vector.load %arg1[%c0_8, %c0_9, %c2] : memref<1x8x256xf32, #tpu.memory_space<vmem>>, vector<1x8x128xf32>
    %9 = vector.shape_cast %8 : vector<1x8x128xf32> to vector<8x128xf32>
    %c0_10 = arith.constant 0 : index
    %c0_11 = arith.constant 0 : index
    %c3 = arith.constant 3 : index
    %10 = vector.load %arg1[%c0_10, %c0_11, %c3] : memref<1x8x256xf32, #tpu.memory_space<vmem>>, vector<1x8x128xf32>
    %11 = vector.shape_cast %10 : vector<1x8x128xf32> to vector<8x128xf32>
    %12 = tpu.concatenate %5, %7, %9, %11 in 0 : vector<8x128xf32>, vector<8x128xf32>, vector<8x128xf32>, vector<8x128xf32> -> vector<32x128xf32>
    %c0_12 = arith.constant 0 : index
    %c0_13 = arith.constant 0 : index
    %13 = vector.load %arg2[%c0_12, %c0_13] : memref<8x32xf32, #tpu.memory_space<vmem>>, vector<8x32xf32>
    %cst_14 = arith.constant dense<0.000000e+00> : vector<8x128xf32>
    %14 = tpu.matmul %13, %12, %cst_14 {dimension_numbers = #tpu.dot_dimension_numbers<[1], [0], [0], [1], [0, 0, 1, 1], [], []>} : vector<8x32xf32>, vector<32x128xf32>, vector<8x128xf32> -> vector<8x128xf32>
    %c0_15 = arith.constant 0 : index
    %c0_16 = arith.constant 0 : index
    %15 = vector.load %arg3[%c0_15, %c0_16] : memref<8x1xf32, #tpu.memory_space<vmem>>, vector<8x1xf32>
    %16 = vector.broadcast %15 : vector<8x1xf32> to vector<8x128xf32>
    %17 = arith.addf %14, %16 : vector<8x128xf32>
    %cst_17 = arith.constant 5.000000e-01 : f32
    %18 = vector.broadcast %cst_17 : f32 to vector<8x128xf32>
    %19 = arith.mulf %18, %17 : vector<8x128xf32>
    %cst_18 = arith.constant 0.707106769 : f32
    %20 = vector.broadcast %cst_18 : f32 to vector<8x128xf32>
    %21 = arith.mulf %17, %20 : vector<8x128xf32>
    %22 = math.erf %21 : vector<8x128xf32>
    %cst_19 = arith.constant 1.000000e+00 : f32
    %23 = vector.broadcast %cst_19 : f32 to vector<8x128xf32>
    %24 = arith.addf %23, %22 : vector<8x128xf32>
    %25 = arith.mulf %19, %24 : vector<8x128xf32>
    %c0_20 = arith.constant 0 : index
    %c0_21 = arith.constant 0 : index
    %26 = vector.load %arg8[%c0_20, %c0_21] : memref<1x128xf32, #tpu.memory_space<vmem>>, vector<1x128xf32>
    %27 = vector.broadcast %26 : vector<1x128xf32> to vector<8x128xf32>
    %28 = arith.mulf %25, %27 : vector<8x128xf32>
    %c0_22 = arith.constant 0 : index
    %c0_23 = arith.constant 0 : index
    %29 = vector.load %arg11[%c0_22, %c0_23] : memref<8x256xf32, #tpu.memory_space<vmem>>, vector<8x128xf32>
    tpu.vector_store %arg11[%c0_22, %c0_23], %28 {strides = array<i32>} : memref<8x256xf32, #tpu.memory_space<vmem>>, vector<8x128xf32>,
    %c0_24 = arith.constant 0 : index
    %c0_25 = arith.constant 0 : index
    %30 = vector.load %arg11[%c0_24, %c0_25] : memref<8x256xf32, #tpu.memory_space<vmem>>, vector<8x128xf32>
    %c0_26 = arith.constant 0 : index
    %c1_27 = arith.constant 1 : index
    %31 = vector.load %arg11[%c0_26, %c1_27] : memref<8x256xf32, #tpu.memory_space<vmem>>, vector<8x128xf32>
    %c0_28 = arith.constant 0 : index
    %c2_29 = arith.constant 2 : index
    %32 = vector.load %arg11[%c0_28, %c2_29] : memref<8x256xf32, #tpu.memory_space<vmem>>, vector<8x128xf32>
    %c0_30 = arith.constant 0 : index
    %c3_31 = arith.constant 3 : index
    %33 = vector.load %arg11[%c0_30, %c3_31] : memref<8x256xf32, #tpu.memory_space<vmem>>, vector<8x128xf32>
    %34 = tpu.concatenate %30, %31, %32, %33 in 0 : vector<8x128xf32>, vector<8x128xf32>, vector<8x128xf32>, vector<8x128xf32> -> vector<32x128xf32>
    %c0_32 = arith.constant 0 : index
    %c0_33 = arith.constant 0 : index
    %35 = vector.load %arg4[%c0_32, %c0_33] : memref<16x32xf32, #tpu.memory_space<vmem>>, vector<16x32xf32>
    %cst_34 = arith.constant dense<0.000000e+00> : vector<16x128xf32>
    %36 = tpu.matmul %35, %34, %cst_34 {dimension_numbers = #tpu.dot_dimension_numbers<[1], [0], [0], [1], [0, 0, 1, 1], [], []>} : vector<16x32xf32>, vector<32x128xf32>, vector<16x128xf32> -> vector<16x128xf32>
    %c0_35 = arith.constant 0 : index
    %c0_36 = arith.constant 0 : index
    %37 = vector.load %arg5[%c0_35, %c0_36] : memref<16x1xf32, #tpu.memory_space<vmem>>, vector<16x1xf32>
    %38 = vector.broadcast %37 : vector<16x1xf32> to vector<16x128xf32>
    %39 = arith.addf %36, %38 : vector<16x128xf32>
    %cst_37 = arith.constant 5.000000e-01 : f32
    %40 = vector.broadcast %cst_37 : f32 to vector<16x128xf32>
    %41 = arith.mulf %40, %39 : vector<16x128xf32>
    %cst_38 = arith.constant 0.707106769 : f32
    %42 = vector.broadcast %cst_38 : f32 to vector<16x128xf32>
    %43 = arith.mulf %39, %42 : vector<16x128xf32>
    %44 = math.erf %43 : vector<16x128xf32>
    %cst_39 = arith.constant 1.000000e+00 : f32
    %45 = vector.broadcast %cst_39 : f32 to vector<16x128xf32>
    %46 = arith.addf %45, %44 : vector<16x128xf32>
    %47 = arith.mulf %41, %46 : vector<16x128xf32>
    %c0_40 = arith.constant 0 : index
    %c0_41 = arith.constant 0 : index
    %48 = vector.load %arg9[%c0_40, %c0_41] : memref<1x128xf32, #tpu.memory_space<vmem>>, vector<1x128xf32>
    %49 = vector.broadcast %48 : vector<1x128xf32> to vector<16x128xf32>
    %50 = arith.mulf %47, %49 : vector<16x128xf32>
    %c0_42 = arith.constant 0 : index
    %c0_43 = arith.constant 0 : index
    %51 = vector.load %arg12[%c0_42, %c0_43] : memref<16x256xf32, #tpu.memory_space<vmem>>, vector<16x128xf32>
    tpu.vector_store %arg12[%c0_42, %c0_43], %50 {strides = array<i32>} : memref<16x256xf32, #tpu.memory_space<vmem>>, vector<16x128xf32>,
    %c0_44 = arith.constant 0 : index
    %c0_45 = arith.constant 0 : index
    %52 = vector.load %arg12[%c0_44, %c0_45] : memref<16x256xf32, #tpu.memory_space<vmem>>, vector<16x128xf32>
    %c0_46 = arith.constant 0 : index
    %c1_47 = arith.constant 1 : index
    %53 = vector.load %arg12[%c0_46, %c1_47] : memref<16x256xf32, #tpu.memory_space<vmem>>, vector<16x128xf32>
    %c0_48 = arith.constant 0 : index
    %c2_49 = arith.constant 2 : index
    %54 = vector.load %arg12[%c0_48, %c2_49] : memref<16x256xf32, #tpu.memory_space<vmem>>, vector<16x128xf32>
    %c0_50 = arith.constant 0 : index
    %c3_51 = arith.constant 3 : index
    %55 = vector.load %arg12[%c0_50, %c3_51] : memref<16x256xf32, #tpu.memory_space<vmem>>, vector<16x128xf32>
    %56 = tpu.concatenate %52, %53, %54, %55 in 0 : vector<16x128xf32>, vector<16x128xf32>, vector<16x128xf32>, vector<16x128xf32> -> vector<64x128xf32>
    %c0_52 = arith.constant 0 : index
    %c0_53 = arith.constant 0 : index
    %57 = vector.load %arg6[%c0_52, %c0_53] : memref<32x64xf32, #tpu.memory_space<vmem>>, vector<32x64xf32>
    %cst_54 = arith.constant dense<0.000000e+00> : vector<32x128xf32>
    %58 = tpu.matmul %57, %56, %cst_54 {dimension_numbers = #tpu.dot_dimension_numbers<[1], [0], [0], [1], [0, 0, 1, 1], [], []>} : vector<32x64xf32>, vector<64x128xf32>, vector<32x128xf32> -> vector<32x128xf32>
    %c0_55 = arith.constant 0 : index
    %c0_56 = arith.constant 0 : index
    %59 = vector.load %arg7[%c0_55, %c0_56] : memref<32x1xf32, #tpu.memory_space<vmem>>, vector<32x1xf32>
    %60 = vector.broadcast %59 : vector<32x1xf32> to vector<32x128xf32>
    %61 = arith.addf %58, %60 : vector<32x128xf32>
    %62 = arith.negf %61 : vector<32x128xf32>
    %63 = math.exp %62 : vector<32x128xf32>
    %cst_57 = arith.constant 1.000000e+00 : f32
    %64 = vector.broadcast %cst_57 : f32 to vector<32x128xf32>
    %65 = arith.addf %64, %63 : vector<32x128xf32>
    %66 = arith.divf %64, %65 : vector<32x128xf32>
    %c0_58 = arith.constant 0 : index
    %c0_59 = arith.constant 0 : index
    %c0_60 = arith.constant 0 : index
    %67 = vector.load %arg10[%c0_58, %c0_59, %c0_60] : memref<1x32x128xf32, #tpu.memory_space<vmem>>, vector<1x32x128xf32>
    %68 = vector.shape_cast %67 : vector<1x32x128xf32> to vector<32x128xf32>
    %69 = vector.shape_cast %66 : vector<32x128xf32> to vector<1x32x128xf32>
    tpu.vector_store %arg10[%c0_58, %c0_59, %c0_60], %69 {strides = array<i32>} : memref<1x32x128xf32, #tpu.memory_space<vmem>>, vector<1x32x128xf32>,
    return
  }
  func.func @transform_0(%arg0: i32) -> (i32, i32, i32) {
    %c0_i32 = arith.constant 0 : i32
    %c0_i32_0 = arith.constant 0 : i32
    %c0_i32_1 = arith.constant 0 : i32
    return %arg0, %c0_i32, %c0_i32_0 : i32, i32, i32
  }
  func.func @transform_1(%arg0: i32) -> (i32, i32) {
    %c0_i32 = arith.constant 0 : i32
    %c0_i32_0 = arith.constant 0 : i32
    %c0_i32_1 = arith.constant 0 : i32
    return %c0_i32, %c0_i32_0 : i32, i32
  }
  func.func @transform_2(%arg0: i32) -> (i32, i32) {
    %c0_i32 = arith.constant 0 : i32
    %c0_i32_0 = arith.constant 0 : i32
    %c0_i32_1 = arith.constant 0 : i32
    return %c0_i32, %c0_i32_0 : i32, i32
  }
  func.func @transform_3(%arg0: i32) -> (i32, i32) {
    %c0_i32 = arith.constant 0 : i32
    %c0_i32_0 = arith.constant 0 : i32
    %c0_i32_1 = arith.constant 0 : i32
    return %c0_i32, %c0_i32_0 : i32, i32
  }
  func.func @transform_4(%arg0: i32) -> (i32, i32) {
    %c0_i32 = arith.constant 0 : i32
    %c0_i32_0 = arith.constant 0 : i32
    %c0_i32_1 = arith.constant 0 : i32
    return %c0_i32, %c0_i32_0 : i32, i32
  }
  func.func @transform_5(%arg0: i32) -> (i32, i32) {
    %c0_i32 = arith.constant 0 : i32
    %c0_i32_0 = arith.constant 0 : i32
    %c0_i32_1 = arith.constant 0 : i32
    return %c0_i32, %c0_i32_0 : i32, i32
  }
  func.func @transform_6(%arg0: i32) -> (i32, i32) {
    %c0_i32 = arith.constant 0 : i32
    %c0_i32_0 = arith.constant 0 : i32
    %c0_i32_1 = arith.constant 0 : i32
    return %c0_i32, %c0_i32_0 : i32, i32
  }
  func.func @transform_7(%arg0: i32) -> (i32, i32) {
    %c0_i32 = arith.constant 0 : i32
    %c0_i32_0 = arith.constant 0 : i32
    %c0_i32_1 = arith.constant 0 : i32
    return %c0_i32, %c0_i32_0 : i32, i32
  }
  func.func @transform_8(%arg0: i32) -> (i32, i32) {
    %c0_i32 = arith.constant 0 : i32
    %c0_i32_0 = arith.constant 0 : i32
    %c0_i32_1 = arith.constant 0 : i32
    return %c0_i32, %c0_i32_0 : i32, i32
  }
  func.func @transform_9(%arg0: i32) -> (i32, i32, i32) {
    %c0_i32 = arith.constant 0 : i32
    %c0_i32_0 = arith.constant 0 : i32
    %c0_i32_1 = arith.constant 0 : i32
    return %arg0, %c0_i32, %c0_i32_0 : i32, i32, i32
  }
}

</mosaic_0001>

<llo_original>
// kernel: tpu_custom_call.1
$region0: #{tpu_custom_call.1}
  #allocation0 [shape = 'u32[]', space=smem, size = 0x4, offset = 0x4, fixed_abs, tag = 'smem constant byte address 0x4 - core index']
  #allocation1 [shape = 'u32[144,128]{1,0:T(1,128)}', space=vmem, size = 0x12000, scoped, tag = 'internal scratch']
  #allocation2 [shape = 'f32[8,256]{1,0:T(8,128)}', space=vmem, size = 0x2000, scoped, tag = 'scratch operand']
  #allocation3 [shape = 'f32[16,256]{1,0:T(8,128)}', space=vmem, size = 0x4000, scoped, tag = 'scratch operand']
  %s0 = inlined_call_operand.vmem [shape: f32[1,8,256], index: 0, kind: input, shape index: {}]
  %s1 = inlined_call_operand.hbm [shape: f32[8,32], index: 1, kind: input, shape index: {}]
  %s2 = inlined_call_operand.vmem [shape: f32[8,1], index: 2, kind: input, shape index: {}]
  %s3 = inlined_call_operand.vmem [shape: f32[16,32], index: 3, kind: input, shape index: {}]
  %s4 = inlined_call_operand.vmem [shape: f32[16,1], index: 4, kind: input, shape index: {}]
  %s5 = inlined_call_operand.vmem [shape: f32[32,64], index: 5, kind: input, shape index: {}]
  %s6 = inlined_call_operand.vmem [shape: f32[32,1], index: 6, kind: input, shape index: {}]
  %s7 = inlined_call_operand.vmem [shape: f32[1,128], index: 7, kind: input, shape index: {}]
  %s8 = inlined_call_operand.vmem [shape: f32[1,128], index: 8, kind: input, shape index: {}]
  %s9 = inlined_call_operand.hbm [shape: f32[1,32,128], index: 9, kind: output, shape index: {}]
  %s10 = sld [smem:[#allocation0]]
  $region50: #{tpu_custom_call.1} parent=0
    _
  %s12 = ssub.s32 1, %s10
  %s13 = scalar_select 0, %s12, %s10
  $region1: #{tpu_custom_call.1} parent=0
    #allocation4 [shape = 'u8[4096]{0}', space=vmem, size = 0x1000, scoped, tag = 'input window, operand 1, single buffered']
    #allocation5 [shape = 's32[1]{0}', space=sflag, size = 0x4, scoped, tag = 'scoped memory for tpu_custom_call.1']
    #allocation6 [shape = 's32[1]{0}', space=sflag, size = 0x4, scoped, tag = 'scoped memory for tpu_custom_call.1']
    #allocation7 [shape = 'u8[16384]{0}', space=vmem, size = 0x4000, scoped, tag = 'output window, operand 0, single buffered']
    %14 = vsyncpa [#allocation5], 0
    %15 = vsyncpa [#allocation6], 0
    // Predicated region
    $region2: #{tpu_custom_call.1} parent=1 // pred_check
      _
    $region3: #{tpu_custom_call.1} parent=1 // pred_check_branch
      %17 = sbr.rel (0) target = $region5
    $region4: #{tpu_custom_call.1} parent=1 // pred_region
      _
    $region5: #{tpu_custom_call.1} parent=1 // pred_fallthru
      _
    // Predicated region
    $region6: #{tpu_custom_call.1} parent=1 // pred_check
      _
    $region7: #{tpu_custom_call.1} parent=1 // pred_check_branch
      %19 = sbr.rel (0) target = $region9
    $region8: #{tpu_custom_call.1} parent=1 // pred_region
      %s21 = ssub.s32 128, 128
      %22 = vsyncadd [#allocation5], %s21
      %s24 = sshll.u32 [#allocation4], 4
      %s25 = int_to_ptr.vmem [resolvable:$true] %s24
      %27 = dma.hbm_to_vmem [thread:$0]  %s1, 128, %s25, [#allocation5]
    $region9: #{tpu_custom_call.1} parent=1 // pred_fallthru
      _
    // Predicated region
    $region10: #{tpu_custom_call.1} parent=1 // pred_check
      _
    $region11: #{tpu_custom_call.1} parent=1 // pred_check_branch
      %29 = sbr.rel (0) target = $region13
    $region12: #{tpu_custom_call.1} parent=1 // pred_region
      _
    $region13: #{tpu_custom_call.1} parent=1 // pred_fallthru
      _
    // Predicated region
    $region14: #{tpu_custom_call.1} parent=1 // pred_check
      _
    $region15: #{tpu_custom_call.1} parent=1 // pred_check_branch
      %31 = sbr.rel (0) target = $region17
    $region16: #{tpu_custom_call.1} parent=1 // pred_region
      _
    $region17: #{tpu_custom_call.1} parent=1 // pred_fallthru
      _
    // Predicated region
    $region18: #{tpu_custom_call.1} parent=1 // pred_check
      _
    $region19: #{tpu_custom_call.1} parent=1 // pred_check_branch
      %33 = sbr.rel (0) target = $region21
    $region20: #{tpu_custom_call.1} parent=1 // pred_region
      _
    $region21: #{tpu_custom_call.1} parent=1 // pred_fallthru
      _
    // Predicated region
    $region22: #{tpu_custom_call.1} parent=1 // pred_check
      _
    $region23: #{tpu_custom_call.1} parent=1 // pred_check_branch
      %35 = sbr.rel (0) target = $region25
    $region24: #{tpu_custom_call.1} parent=1 // pred_region
      _
    $region25: #{tpu_custom_call.1} parent=1 // pred_fallthru
      _
    // Predicated region
    $region26: #{tpu_custom_call.1} parent=1 // pred_check
      _
    $region27: #{tpu_custom_call.1} parent=1 // pred_check_branch
      %37 = sbr.rel (0) target = $region29
    $region28: #{tpu_custom_call.1} parent=1 // pred_region
      _
    $region29: #{tpu_custom_call.1} parent=1 // pred_fallthru
      _
    // Predicated region
    $region30: #{tpu_custom_call.1} parent=1 // pred_check
      _
    $region31: #{tpu_custom_call.1} parent=1 // pred_check_branch
      %39 = sbr.rel (0) target = $region33
    $region32: #{tpu_custom_call.1} parent=1 // pred_region
      _
    $region33: #{tpu_custom_call.1} parent=1 // pred_fallthru
      _
    // Predicated region
    $region34: #{tpu_custom_call.1} parent=1 // pred_check
      _
    $region35: #{tpu_custom_call.1} parent=1 // pred_check_branch
      %41 = sbr.rel (0) target = $region37
    $region36: #{tpu_custom_call.1} parent=1 // pred_region
      _
    $region37: #{tpu_custom_call.1} parent=1 // pred_fallthru
      _
    // Predicated region
    $region38: #{tpu_custom_call.1} parent=1 // pred_check
      _
    $region39: #{tpu_custom_call.1} parent=1 // pred_check_branch
      %43 = sbr.rel (0) target = $region41
    $region40: #{tpu_custom_call.1} parent=1 // pred_region
      %44 = dma.done [#allocation5], 128
    $region41: #{tpu_custom_call.1} parent=1 // pred_fallthru
      _
    %45 = vst [vmem:[#allocation2 + $0x8] sm:$0xff] 0.0
    %46 = vst [vmem:[#allocation3 + $0x8] sm:$0xff] 0.0
    %47 = vst [vmem:[#allocation3 + $0x18] sm:$0xff] 0.0
    %v48 = vld [vmem:[%s0] sm:$0xff]
    %v49 = vld [vmem:[%s0] sm:$0xff]
    %v50 = vld [vmem:[%s0 + $0x8] sm:$0xff]
    %53 = vrot.lane.b32.xlu0 %v49, 127
    %v54 = vpop.permute.xlu0 %53
    %55 = vrot.lane.b32.xlu0 %v50, 127
    %v56 = vpop.permute.xlu0 %55
    %vm57 = vcmask 1039360
    %v58 = vsel %vm57, %v54, %v56
    %60 = vrot.lane.b32.xlu0 %v49, 126
    %v61 = vpop.permute.xlu0 %60
    %62 = vrot.lane.b32.xlu0 %v50, 126
    %v63 = vpop.permute.xlu0 %62
    %vm64 = vcmask 1031168
    %v65 = vsel %vm64, %v61, %v63
    %67 = vrot.lane.b32.xlu0 %v49, 125
    %v68 = vpop.permute.xlu0 %67
    %69 = vrot.lane.b32.xlu0 %v50, 125
    %v70 = vpop.permute.xlu0 %69
    %vm71 = vcmask 1022976
    %v72 = vsel %vm71, %v68, %v70
    %v74 = vld [vmem:[#allocation4] sm:$0xff]
    %v75 = vld [vmem:[%s2] sm:$0xff]
    %77 = vset.pattern.permute.xlu0 0
    %78 = vperm.xlu0 %77, %v75
    %v79 = vpop.permute.xlu0 %78
    %vm81 = vcmask 261120
    %v83 = vsel %vm81, %v74, 0
    %85 = vmatprep.subr.mxu0 0.0
    %86 = vmatpush1.msra.mxu0 %v48
    %87 = vmatprep.subr.mxu0 0.0
    %88 = vmatpush1.msra.mxu0 %v58
    %89 = vmatprep.subr.mxu0 0.0
    %90 = vmatpush1.msra.mxu0 %v65
    %91 = vmatprep.subr.mxu0 0.0
    %92 = vmatpush1.msra.mxu0 %v72
    %93 = vmatprep.subr.mxu0 0.0
    %94 = vmatpush1.msra.mxu0 0.0
    %95 = vmatprep.subr.mxu0 0.0
    %96 = vmatpush1.msra.mxu0 0.0
    %97 = vmatprep.subr.mxu0 0.0
    %98 = vmatpush1.msra.mxu0 0.0
    %99 = vmatprep.subr.mxu0 0.0
    %100 = vmatpush1.msra.mxu0 0.0
    %101 = vmatprep.subr.mxu0 0.0
    %102 = vmatpush1.msra.mxu0 0.0
    %103 = vmatprep.subr.mxu0 0.0
    %104 = vmatpush1.msra.mxu0 0.0
    %105 = vmatprep.subr.mxu0 0.0
    %106 = vmatpush1.msra.mxu0 0.0
    %107 = vmatprep.subr.mxu0 0.0
    %108 = vmatpush1.msra.mxu0 0.0
    %109 = vmatprep.subr.mxu0 0.0
    %110 = vmatpush1.msra.mxu0 0.0
    %111 = vmatprep.subr.mxu0 0.0
    %112 = vmatpush1.msra.mxu0 0.0
    %113 = vmatprep.subr.mxu0 0.0
    %114 = vmatpush1.msra.mxu0 0.0
    %115 = vmatprep.subr.mxu0 0.0
    %116 = vmatpush1.msra.mxu0 0.0
    %117 = vmatprep.subr.mxu0 0.0
    %118 = vmatpush1.msra.mxu0 0.0
    %119 = vmatprep.subr.mxu0 0.0
    %120 = vmatpush1.msra.mxu0 0.0
    %121 = vmatprep.subr.mxu0 0.0
    %122 = vmatpush1.msra.mxu0 0.0
    %123 = vmatprep.subr.mxu0 0.0
    %124 = vmatpush1.msra.mxu0 0.0
    %125 = vmatprep.subr.mxu0 0.0
    %126 = vmatpush1.msra.mxu0 0.0
    %127 = vmatprep.subr.mxu0 0.0
    %128 = vmatpush1.msra.mxu0 0.0
    %129 = vmatprep.subr.mxu0 0.0
    %130 = vmatpush1.msra.mxu0 0.0
    %131 = vmatprep.subr.mxu0 0.0
    %132 = vmatpush1.msra.mxu0 0.0
    %133 = vmatprep.subr.mxu0 0.0
    %134 = vmatpush1.msra.mxu0 0.0
    %135 = vmatprep.subr.mxu0 0.0
    %136 = vmatpush1.msra.mxu0 0.0
    %137 = vmatprep.subr.mxu0 0.0
    %138 = vmatpush1.msra.mxu0 0.0
    %139 = vmatprep.subr.mxu0 0.0
    %140 = vmatpush1.msra.mxu0 0.0
    %141 = vmatprep.subr.mxu0 0.0
    %142 = vmatpush1.msra.mxu0 0.0
    %143 = vmatprep.subr.mxu0 0.0
    %144 = vmatpush1.msra.mxu0 0.0
    %145 = vmatprep.subr.mxu0 0.0
    %146 = vmatpush1.msra.mxu0 0.0
    %147 = vmatprep.subr.mxu0 0.0
    %148 = vmatpush1.msra.mxu0 0.0
    %149 = vmatprep.mubr.f32.mxu0 0.0
    %150 = vmatmul.mubr.f32.gmra.mrb[0].mxu0 %v83
    %v151 = vpop.f32.mrb[0].mxu0
    %v152 = vadd.f32 %v79, %v151
    %v153 = vpop.f32.mrb[0].mxu0
    %154 = vdwg.mxu0
    %v155 = vmul.f32 %v152, 0.5
    %v156 = vmul.f32 %v152, 0.70710677
    %v157 = verf.f32.pop %v156
    %v158 = vadd.f32 %v157, 1.0
    %v159 = vmul.f32 %v155, %v158
    %v160 = vld [vmem:[%s7] sm:$0x1]
    %v162 = vlaneseq
    %v163 = vshrl.u32 %v162, 7
    %v164 = vsub.s32 0, %v163
    %v165 = vrot.slane %v160, %v164
    %v167 = vmul.f32 %v159, %v165
    %168 = vst [vmem:[#allocation2] sm:$0xff] %v167
    %v169 = vld [vmem:[#allocation2] sm:$0xff]
    %v170 = vld [vmem:[#allocation2] sm:$0xff]
    %v171 = vld [vmem:[#allocation2 + $0x8] sm:$0xff]
    %174 = vrot.lane.b32.xlu0 %v170, 127
    %v175 = vpop.permute.xlu0 %174
    %176 = vrot.lane.b32.xlu0 %v171, 127
    %v177 = vpop.permute.xlu0 %176
    %v178 = vsel %vm57, %v175, %v177
    %180 = vrot.lane.b32.xlu0 %v170, 126
    %v181 = vpop.permute.xlu0 %180
    %182 = vrot.lane.b32.xlu0 %v171, 126
    %v183 = vpop.permute.xlu0 %182
    %v184 = vsel %vm64, %v181, %v183
    %186 = vrot.lane.b32.xlu0 %v170, 125
    %v187 = vpop.permute.xlu0 %186
    %188 = vrot.lane.b32.xlu0 %v171, 125
    %v189 = vpop.permute.xlu0 %188
    %v190 = vsel %vm71, %v187, %v189
    %v192 = vld [vmem:[%s3] sm:$0xff]
    %v193 = vld [vmem:[%s3 + $0x8] sm:$0xff]
    %v194 = vld [vmem:[%s4] sm:$0xff]
    %v195 = vld [vmem:[%s4 + $0x8] sm:$0xff]
    %197 = vset.pattern.permute.xlu0 0
    %198 = vperm.xlu0 %197, %v194
    %v199 = vpop.permute.xlu0 %198
    %202 = vset.pattern.permute.xlu0 0
    %203 = vperm.xlu0 %202, %v195
    %v204 = vpop.permute.xlu0 %203
    %v207 = vsel %vm81, %v192, 0
    %v210 = vsel %vm81, %v193, 0
    %212 = vmatprep.subr.mxu0 0.0
    %213 = vmatpush1.msra.mxu0 %v169
    %214 = vmatprep.subr.mxu0 0.0
    %215 = vmatpush1.msra.mxu0 %v178
    %216 = vmatprep.subr.mxu0 0.0
    %217 = vmatpush1.msra.mxu0 %v184
    %218 = vmatprep.subr.mxu0 0.0
    %219 = vmatpush1.msra.mxu0 %v190
    %220 = vmatprep.subr.mxu0 0.0
    %221 = vmatpush1.msra.mxu0 0.0
    %222 = vmatprep.subr.mxu0 0.0
    %223 = vmatpush1.msra.mxu0 0.0
    %224 = vmatprep.subr.mxu0 0.0
    %225 = vmatpush1.msra.mxu0 0.0
    %226 = vmatprep.subr.mxu0 0.0
    %227 = vmatpush1.msra.mxu0 0.0
    %228 = vmatprep.subr.mxu0 0.0
    %229 = vmatpush1.msra.mxu0 0.0
    %230 = vmatprep.subr.mxu0 0.0
    %231 = vmatpush1.msra.mxu0 0.0
    %232 = vmatprep.subr.mxu0 0.0
    %233 = vmatpush1.msra.mxu0 0.0
    %234 = vmatprep.subr.mxu0 0.0
    %235 = vmatpush1.msra.mxu0 0.0
    %236 = vmatprep.subr.mxu0 0.0
    %237 = vmatpush1.msra.mxu0 0.0
    %238 = vmatprep.subr.mxu0 0.0
    %239 = vmatpush1.msra.mxu0 0.0
    %240 = vmatprep.subr.mxu0 0.0
    %241 = vmatpush1.msra.mxu0 0.0
    %242 = vmatprep.subr.mxu0 0.0
    %243 = vmatpush1.msra.mxu0 0.0
    %244 = vmatprep.subr.mxu0 0.0
    %245 = vmatpush1.msra.mxu0 0.0
    %246 = vmatprep.subr.mxu0 0.0
    %247 = vmatpush1.msra.mxu0 0.0
    %248 = vmatprep.subr.mxu0 0.0
    %249 = vmatpush1.msra.mxu0 0.0
    %250 = vmatprep.subr.mxu0 0.0
    %251 = vmatpush1.msra.mxu0 0.0
    %252 = vmatprep.subr.mxu0 0.0
    %253 = vmatpush1.msra.mxu0 0.0
    %254 = vmatprep.subr.mxu0 0.0
    %255 = vmatpush1.msra.mxu0 0.0
    %256 = vmatprep.subr.mxu0 0.0
    %257 = vmatpush1.msra.mxu0 0.0
    %258 = vmatprep.subr.mxu0 0.0
    %259 = vmatpush1.msra.mxu0 0.0
    %260 = vmatprep.subr.mxu0 0.0
    %261 = vmatpush1.msra.mxu0 0.0
    %262 = vmatprep.subr.mxu0 0.0
    %263 = vmatpush1.msra.mxu0 0.0
    %264 = vmatprep.subr.mxu0 0.0
    %265 = vmatpush1.msra.mxu0 0.0
    %266 = vmatprep.subr.mxu0 0.0
    %267 = vmatpush1.msra.mxu0 0.0
    %268 = vmatprep.subr.mxu0 0.0
    %269 = vmatpush1.msra.mxu0 0.0
    %270 = vmatprep.subr.mxu0 0.0
    %271 = vmatpush1.msra.mxu0 0.0
    %272 = vmatprep.subr.mxu0 0.0
    %273 = vmatpush1.msra.mxu0 0.0
    %274 = vmatprep.subr.mxu0 0.0
    %275 = vmatpush1.msra.mxu0 0.0
    %276 = vmatprep.mubr.f32.mxu0 0.0
    %277 = vmatmul.mubr.f32.gmra.mrb[0].mxu0 %v207
    %v278 = vpop.f32.mrb[0].mxu0
    %v279 = vadd.f32 %v199, %v278
    %v280 = vpop.f32.mrb[0].mxu0
    %281 = vmatprep.mubr.f32.mxu0 0.0
    %282 = vmatmul.mubr.f32.gmra.mrb[0].mxu0 %v210
    %v283 = vpop.f32.mrb[0].mxu0
    %v284 = vadd.f32 %v204, %v283
    %v285 = vpop.f32.mrb[0].mxu0
    %286 = vdwg.mxu0
    %v287 = vmul.f32 %v279, 0.5
    %v288 = vmul.f32 %v284, 0.5
    %v289 = vmul.f32 %v279, 0.70710677
    %v290 = vmul.f32 %v284, 0.70710677
    %v291 = verf.f32.pop %v289
    %v292 = verf.f32.pop %v290
    %v293 = vadd.f32 %v291, 1.0
    %v294 = vadd.f32 %v292, 1.0
    %v295 = vmul.f32 %v287, %v293
    %v296 = vmul.f32 %v288, %v294
    %v297 = vld [vmem:[%s8] sm:$0x1]
    %v299 = vlaneseq
    %v300 = vshrl.u32 %v299, 7
    %v301 = vsub.s32 0, %v300
    %v302 = vrot.slane %v297, %v301
    %v304 = vmul.f32 %v295, %v302
    %v305 = vmul.f32 %v296, %v302
    %306 = vst [vmem:[#allocation3] sm:$0xff] %v304
    %307 = vst [vmem:[#allocation3 + $0x10] sm:$0xff] %v305
    %v308 = vld [vmem:[#allocation3] sm:$0xff]
    %v309 = vld [vmem:[#allocation3 + $0x10] sm:$0xff]
    %v310 = vld [vmem:[#allocation3] sm:$0xff]
    %v311 = vld [vmem:[#allocation3 + $0x8] sm:$0xff]
    %v312 = vld [vmem:[#allocation3 + $0x10] sm:$0xff]
    %v313 = vld [vmem:[#allocation3 + $0x18] sm:$0xff]
    %318 = vrot.lane.b32.xlu0 %v310, 127
    %v319 = vpop.permute.xlu0 %318
    %320 = vrot.lane.b32.xlu0 %v311, 127
    %v321 = vpop.permute.xlu0 %320
    %322 = vrot.lane.b32.xlu0 %v312, 127
    %v323 = vpop.permute.xlu0 %322
    %324 = vrot.lane.b32.xlu0 %v313, 127
    %v325 = vpop.permute.xlu0 %324
    %v326 = vsel %vm57, %v319, %v321
    %v327 = vsel %vm57, %v323, %v325
    %330 = vrot.lane.b32.xlu0 %v310, 126
    %v331 = vpop.permute.xlu0 %330
    %332 = vrot.lane.b32.xlu0 %v311, 126
    %v333 = vpop.permute.xlu0 %332
    %334 = vrot.lane.b32.xlu0 %v312, 126
    %v335 = vpop.permute.xlu0 %334
    %336 = vrot.lane.b32.xlu0 %v313, 126
    %v337 = vpop.permute.xlu0 %336
    %v338 = vsel %vm64, %v331, %v333
    %v339 = vsel %vm64, %v335, %v337
    %342 = vrot.lane.b32.xlu0 %v310, 125
    %v343 = vpop.permute.xlu0 %342
    %344 = vrot.lane.b32.xlu0 %v311, 125
    %v345 = vpop.permute.xlu0 %344
    %346 = vrot.lane.b32.xlu0 %v312, 125
    %v347 = vpop.permute.xlu0 %346
    %348 = vrot.lane.b32.xlu0 %v313, 125
    %v349 = vpop.permute.xlu0 %348
    %v350 = vsel %vm71, %v343, %v345
    %v351 = vsel %vm71, %v347, %v349
    %v354 = vld [vmem:[%s5] sm:$0xff]
    %v355 = vld [vmem:[%s5 + $0x8] sm:$0xff]
    %v356 = vld [vmem:[%s5 + $0x10] sm:$0xff]
    %v357 = vld [vmem:[%s5 + $0x18] sm:$0xff]
    %v358 = vld [vmem:[%s6] sm:$0xff]
    %v359 = vld [vmem:[%s6 + $0x8] sm:$0xff]
    %v360 = vld [vmem:[%s6 + $0x10] sm:$0xff]
    %v361 = vld [vmem:[%s6 + $0x18] sm:$0xff]
    %363 = vset.pattern.permute.xlu0 0
    %364 = vperm.xlu0 %363, %v358
    %v365 = vpop.permute.xlu0 %364
    %368 = vset.pattern.permute.xlu0 0
    %369 = vperm.xlu0 %368, %v359
    %v370 = vpop.permute.xlu0 %369
    %373 = vset.pattern.permute.xlu0 0
    %374 = vperm.xlu0 %373, %v360
    %v375 = vpop.permute.xlu0 %374
    %378 = vset.pattern.permute.xlu0 0
    %379 = vperm.xlu0 %378, %v361
    %v380 = vpop.permute.xlu0 %379
    %vm382 = vcmask 523264
    %v384 = vsel %vm382, %v354, 0
    %v387 = vsel %vm382, %v355, 0
    %v390 = vsel %vm382, %v356, 0
    %v393 = vsel %vm382, %v357, 0
    %395 = vmatprep.subr.mxu0 0.0
    %396 = vmatpush1.msra.mxu0 %v308
    %397 = vmatprep.subr.mxu0 0.0
    %398 = vmatpush1.msra.mxu0 %v309
    %399 = vmatprep.subr.mxu0 0.0
    %400 = vmatpush1.msra.mxu0 %v326
    %401 = vmatprep.subr.mxu0 0.0
    %402 = vmatpush1.msra.mxu0 %v327
    %403 = vmatprep.subr.mxu0 0.0
    %404 = vmatpush1.msra.mxu0 %v338
    %405 = vmatprep.subr.mxu0 0.0
    %406 = vmatpush1.msra.mxu0 %v339
    %407 = vmatprep.subr.mxu0 0.0
    %408 = vmatpush1.msra.mxu0 %v350
    %409 = vmatprep.subr.mxu0 0.0
    %410 = vmatpush1.msra.mxu0 %v351
    %411 = vmatprep.subr.mxu0 0.0
    %412 = vmatpush1.msra.mxu0 0.0
    %413 = vmatprep.subr.mxu0 0.0
    %414 = vmatpush1.msra.mxu0 0.0
    %415 = vmatprep.subr.mxu0 0.0
    %416 = vmatpush1.msra.mxu0 0.0
    %417 = vmatprep.subr.mxu0 0.0
    %418 = vmatpush1.msra.mxu0 0.0
    %419 = vmatprep.subr.mxu0 0.0
    %420 = vmatpush1.msra.mxu0 0.0
    %421 = vmatprep.subr.mxu0 0.0
    %422 = vmatpush1.msra.mxu0 0.0
    %423 = vmatprep.subr.mxu0 0.0
    %424 = vmatpush1.msra.mxu0 0.0
    %425 = vmatprep.subr.mxu0 0.0
    %426 = vmatpush1.msra.mxu0 0.0
    %427 = vmatprep.subr.mxu0 0.0
    %428 = vmatpush1.msra.mxu0 0.0
    %429 = vmatprep.subr.mxu0 0.0
    %430 = vmatpush1.msra.mxu0 0.0
    %431 = vmatprep.subr.mxu0 0.0
    %432 = vmatpush1.msra.mxu0 0.0
    %433 = vmatprep.subr.mxu0 0.0
    %434 = vmatpush1.msra.mxu0 0.0
    %435 = vmatprep.subr.mxu0 0.0
    %436 = vmatpush1.msra.mxu0 0.0
    %437 = vmatprep.subr.mxu0 0.0
    %438 = vmatpush1.msra.mxu0 0.0
    %439 = vmatprep.subr.mxu0 0.0
    %440 = vmatpush1.msra.mxu0 0.0
    %441 = vmatprep.subr.mxu0 0.0
    %442 = vmatpush1.msra.mxu0 0.0
    %443 = vmatprep.subr.mxu0 0.0
    %444 = vmatpush1.msra.mxu0 0.0
    %445 = vmatprep.subr.mxu0 0.0
    %446 = vmatpush1.msra.mxu0 0.0
    %447 = vmatprep.subr.mxu0 0.0
    %448 = vmatpush1.msra.mxu0 0.0
    %449 = vmatprep.subr.mxu0 0.0
    %450 = vmatpush1.msra.mxu0 0.0
    %451 = vmatprep.subr.mxu0 0.0
    %452 = vmatpush1.msra.mxu0 0.0
    %453 = vmatprep.subr.mxu0 0.0
    %454 = vmatpush1.msra.mxu0 0.0
    %455 = vmatprep.subr.mxu0 0.0
    %456 = vmatpush1.msra.mxu0 0.0
    %457 = vmatprep.subr.mxu0 0.0
    %458 = vmatpush1.msra.mxu0 0.0
    %459 = vmatprep.mubr.f32.mxu0 0.0
    %460 = vmatmul.mubr.f32.gmra.mrb[0].mxu0 %v384
    %v461 = vpop.f32.mrb[0].mxu0
    %v462 = vadd.f32 %v365, %v461
    %v463 = vpop.f32.mrb[0].mxu0
    %464 = vmatprep.mubr.f32.mxu0 0.0
    %465 = vmatmul.mubr.f32.gmra.mrb[0].mxu0 %v387
    %v466 = vpop.f32.mrb[0].mxu0
    %v467 = vadd.f32 %v370, %v466
    %v468 = vpop.f32.mrb[0].mxu0
    %469 = vmatprep.mubr.f32.mxu0 0.0
    %470 = vmatmul.mubr.f32.gmra.mrb[0].mxu0 %v390
    %v471 = vpop.f32.mrb[0].mxu0
    %v472 = vadd.f32 %v375, %v471
    %v473 = vpop.f32.mrb[0].mxu0
    %474 = vmatprep.mubr.f32.mxu0 0.0
    %475 = vmatmul.mubr.f32.gmra.mrb[0].mxu0 %v393
    %v476 = vpop.f32.mrb[0].mxu0
    %v477 = vadd.f32 %v380, %v476
    %v478 = vpop.f32.mrb[0].mxu0
    %479 = vdwg.mxu0
    %v480 = vxor.u32 %v462, 2147483648
    %v481 = vxor.u32 %v467, 2147483648
    %v482 = vxor.u32 %v472, 2147483648
    %v483 = vxor.u32 %v477, 2147483648
    %v484 = vmul.f32 %v480, 1.442695
    %v485 = vpow.pop %v484
    %v486 = vmul.f32 %v481, 1.442695
    %v487 = vpow.pop %v486
    %v488 = vmul.f32 %v482, 1.442695
    %v489 = vpow.pop %v488
    %v490 = vmul.f32 %v483, 1.442695
    %v491 = vpow.pop %v490
    %v492 = vadd.f32 %v485, 1.0
    %v493 = vadd.f32 %v487, 1.0
    %v494 = vadd.f32 %v489, 1.0
    %v495 = vadd.f32 %v491, 1.0
    %v496 = vrcp.pop %v492
    %v497 = vmul.f32 1.0, %v496
    %v498 = vrcp.pop %v493
    %v499 = vmul.f32 1.0, %v498
    %v500 = vrcp.pop %v494
    %v501 = vmul.f32 1.0, %v500
    %v502 = vrcp.pop %v495
    %v503 = vmul.f32 1.0, %v502
    %504 = vst [vmem:[#allocation7] sm:$0xff] %v497
    %505 = vst [vmem:[#allocation7 + $0x8] sm:$0xff] %v499
    %506 = vst [vmem:[#allocation7 + $0x10] sm:$0xff] %v501
    %507 = vst [vmem:[#allocation7 + $0x18] sm:$0xff] %v503
    // Predicated region
    $region42: #{tpu_custom_call.1} parent=1 // pred_check
      _
    $region43: #{tpu_custom_call.1} parent=1 // pred_check_branch
      %509 = sbr.rel (0) target = $region45
    $region44: #{tpu_custom_call.1} parent=1 // pred_region
      %s511 = ssub.s32 512, 512
      %512 = vsyncadd [#allocation6], %s511
      %s513 = sshll.u32 [#allocation7], 4
      %s514 = int_to_ptr.vmem [resolvable:$true] %s513
      %519 = dma.vmem_to_hbm [thread:$0]  %s514, 512, %s9, [#allocation6], 128, 128, 8
    $region45: #{tpu_custom_call.1} parent=1 // pred_fallthru
      _
    // Predicated region
    $region46: #{tpu_custom_call.1} parent=1 // pred_check
      _
    $region47: #{tpu_custom_call.1} parent=1 // pred_check_branch
      %521 = sbr.rel (0) target = $region49
    $region48: #{tpu_custom_call.1} parent=1 // pred_region
      %522 = dma.done [#allocation6], 512
    $region49: #{tpu_custom_call.1} parent=1 // pred_fallthru
      _
    %523 = vsyncpa [#allocation5], 1
    %524 = vsyncpa [#allocation6], 1

</llo_original>
